<compile_context>
chip_gen: v7x
topology: tpu7x:2x2x1
jax: 0.10.0
libtpu: 0.0.40
codegen_flags: <defaults>
</compile_context>

<pallas_src>
import jax
import jax.numpy as jnp
from jax.experimental import pallas as pl
from jax.experimental.pallas import tpu as pltpu

_R = 0.9
_LANES = 128
_SUBLANES = 8
_MAX_TILE_ROWS = 2048  # (2048, 128) f32 = 1 MiB per input per pipeline buffer


def _sq_diff_kernel(y_ref, l_ref, o_ref):
    """Accumulate vreg-shaped partial sums of (y - label)^2 into the output.

    Grid is (splits, tiles_per_split): axis 0 is "parallel" (megacore shard),
    axis 1 is the sequential reduction axis.  o_ref is a (1, 8, 128) f32
    accumulator block that stays resident across axis 1 (same block index);
    the final cross-sublane/lane reduction is deferred to the wrapper.
    """
    j = pl.program_id(1)

    @pl.when(j == 0)
    def _():
        o_ref[...] = jnp.zeros_like(o_ref)

    d = y_ref[...].astype(jnp.float32) - l_ref[...].astype(jnp.float32)
    sq = d * d
    # (tile_rows, 128) -> (tile_rows//8, 8, 128): one vreg per leading index,
    # so the sum over axis 0 is a chain of VPU vreg adds (no big XLU reduce).
    partial = jnp.sum(sq.reshape(-1, _SUBLANES, _LANES), axis=0)
    o_ref[...] += partial[None]


def _round_up(x, m):
    return ((x + m - 1) // m) * m


def l2_loss(y, label):
    assert y.shape == label.shape, "y and label must have the same shape"
    n = y.size

    # Flatten; keep original dtype in HBM (cast to f32 happens in-kernel).
    yf = jnp.ravel(y)
    lf = jnp.ravel(label)

    # Tiling: rows of 128 lanes, row tiles of up to _MAX_TILE_ROWS, optionally
    # split across 2 TensorCores (v7x).  Tile rows are balanced so padding
    # waste stays tiny.
    rows = _round_up(pl.cdiv(n, _LANES), _SUBLANES)
    total_tiles = pl.cdiv(rows, _MAX_TILE_ROWS)
    if total_tiles <= 1:
        splits, tiles_per_split = 1, 1
        tile_rows = rows
    else:
        splits = 2
        tiles_per_split = pl.cdiv(total_tiles, splits)
        tile_rows = _round_up(pl.cdiv(rows, splits * tiles_per_split), _SUBLANES)
    rows_padded = splits * tiles_per_split * tile_rows

    # Zero-pad only the (small) ragged tail; zero diffs contribute 0 to the sum.
    pad = rows_padded * _LANES - n
    if pad:
        yf = jnp.pad(yf, (0, pad))
        lf = jnp.pad(lf, (0, pad))
    y2d = yf.reshape(rows_padded, _LANES)
    l2d = lf.reshape(rows_padded, _LANES)

    def in_index_map(c, j):
        return (c * tiles_per_split + j, 0)

    in_spec = pl.BlockSpec((tile_rows, _LANES), in_index_map)

    elem_bytes = y2d.dtype.itemsize + l2d.dtype.itemsize
    partials = pl.pallas_call(
        _sq_diff_kernel,
        out_shape=jax.ShapeDtypeStruct((splits, _SUBLANES, _LANES), jnp.float32),
        grid=(splits, tiles_per_split),
        in_specs=[in_spec, in_spec],
        out_specs=pl.BlockSpec((1, _SUBLANES, _LANES), lambda c, j: (c, 0, 0)),
        compiler_params=pltpu.CompilerParams(
            dimension_semantics=("parallel", "arbitrary")
        ),
        cost_estimate=pl.CostEstimate(
            flops=3 * n,  # sub, mul, add per element
            transcendentals=0,
            bytes_accessed=n * elem_bytes + splits * _SUBLANES * _LANES * 4,
        ),
    )(y2d, l2d)

    # Tiny final reduce + MSE mean + 1/(2 r^2) scaling.
    return jnp.sum(partials) / (n * 2.0 * _R ** 2)


if __name__ == "__main__":
    key = jax.random.PRNGKey(0)
    k1, k2 = jax.random.split(key)
    # Small shapes consistent with a generic (y, label) pair.
    y = jax.random.normal(k1, (2, 4, 16, 16), dtype=jnp.float32)
    label = jax.random.normal(k2, (2, 4, 16, 16), dtype=jnp.float32)

    loss = jax.block_until_ready(l2_loss(y, label))

    # Reference check in plain JAX.
    ref = jnp.mean((y - label) ** 2) / (2.0 * _R ** 2)
    assert jnp.allclose(loss, ref, rtol=1e-5, atol=1e-6), (loss, ref)

    print("KERNEL_OK")
</pallas_src>

<mosaic_0001>
module attributes {stable_mosaic.version = 11 : i64} {
  func.func @_sq_diff_kernel(%arg0: i32, %arg1: i32, %arg2: memref<16x128xf32, #tpu.memory_space<vmem>>, %arg3: memref<16x128xf32, #tpu.memory_space<vmem>>, %arg4: memref<1x8x128xf32, #tpu.memory_space<vmem>>) attributes {dimension_semantics = [#tpu.dimension_semantics<parallel>, #tpu.dimension_semantics<arbitrary>], iteration_bounds = array<i64: 1, 1>, scalar_prefetch = 0 : i64, scratch_operands = 0 : i64, tpu.core_type = #tpu.core_type<tc>, window_params = [{transform_indices = @transform_0, window_bounds = array<i64: 16, 128>}, {transform_indices = @transform_1, window_bounds = array<i64: 16, 128>}, {transform_indices = @transform_2, window_bounds = array<i64: 1, 8, 128>}]} {
    %c0_i32 = arith.constant 0 : i32
    %0 = arith.cmpi eq, %arg1, %c0_i32 : i32
    %1 = arith.extui %0 : i1 to i32
    %c0_i32_0 = arith.constant 0 : i32
    %2 = arith.cmpi ne, %1, %c0_i32_0 : i32
    scf.if %2 {
      %cst_10 = arith.constant 0.000000e+00 : f32
      %13 = vector.broadcast %cst_10 : f32 to vector<1x8x128xf32>
      %c0_11 = arith.constant 0 : index
      %c0_12 = arith.constant 0 : index
      %c0_13 = arith.constant 0 : index
      %14 = vector.load %arg4[%c0_11, %c0_12, %c0_13] : memref<1x8x128xf32, #tpu.memory_space<vmem>>, vector<1x8x128xf32>
      tpu.vector_store %arg4[%c0_11, %c0_12, %c0_13], %13 {strides = array<i32>} : memref<1x8x128xf32, #tpu.memory_space<vmem>>, vector<1x8x128xf32>,
    } else {
    }
    %c0 = arith.constant 0 : index
    %c0_1 = arith.constant 0 : index
    %3 = vector.load %arg2[%c0, %c0_1] : memref<16x128xf32, #tpu.memory_space<vmem>>, vector<16x128xf32>
    %c0_2 = arith.constant 0 : index
    %c0_3 = arith.constant 0 : index
    %4 = vector.load %arg3[%c0_2, %c0_3] : memref<16x128xf32, #tpu.memory_space<vmem>>, vector<16x128xf32>
    %5 = arith.subf %3, %4 : vector<16x128xf32>
    %6 = arith.mulf %5, %5 : vector<16x128xf32>
    %7 = vector.shape_cast %6 : vector<16x128xf32> to vector<2x8x128xf32>
    %cst = arith.constant dense<0.000000e+00> : vector<8x128xf32>
    %8 = vector.multi_reduction <add>, %7, %cst [0] : vector<2x8x128xf32> to vector<8x128xf32>
    %c0_4 = arith.constant 0 : index
    %c0_5 = arith.constant 0 : index
    %c0_6 = arith.constant 0 : index
    %9 = vector.load %arg4[%c0_4, %c0_5, %c0_6] : memref<1x8x128xf32, #tpu.memory_space<vmem>>, vector<1x8x128xf32>
    %10 = vector.shape_cast %8 : vector<8x128xf32> to vector<1x8x128xf32>
    %11 = arith.addf %9, %10 : vector<1x8x128xf32>
    %c0_7 = arith.constant 0 : index
    %c0_8 = arith.constant 0 : index
    %c0_9 = arith.constant 0 : index
    %12 = vector.load %arg4[%c0_7, %c0_8, %c0_9] : memref<1x8x128xf32, #tpu.memory_space<vmem>>, vector<1x8x128xf32>
    tpu.vector_store %arg4[%c0_7, %c0_8, %c0_9], %11 {strides = array<i32>} : memref<1x8x128xf32, #tpu.memory_space<vmem>>, vector<1x8x128xf32>,
    return
  }
  func.func @transform_0(%arg0: i32, %arg1: i32) -> (i32, i32) {
    %c1_i32 = arith.constant 1 : i32
    %0 = arith.muli %arg0, %c1_i32 : i32
    %1 = arith.addi %0, %arg1 : i32
    %c0_i32 = arith.constant 0 : i32
    %c0_i32_0 = arith.constant 0 : i32
    return %1, %c0_i32 : i32, i32
  }
  func.func @transform_1(%arg0: i32, %arg1: i32) -> (i32, i32) {
    %c1_i32 = arith.constant 1 : i32
    %0 = arith.muli %arg0, %c1_i32 : i32
    %1 = arith.addi %0, %arg1 : i32
    %c0_i32 = arith.constant 0 : i32
    %c0_i32_0 = arith.constant 0 : i32
    return %1, %c0_i32 : i32, i32
  }
  func.func @transform_2(%arg0: i32, %arg1: i32) -> (i32, i32, i32) {
    %c0_i32 = arith.constant 0 : i32
    %c0_i32_0 = arith.constant 0 : i32
    %c0_i32_1 = arith.constant 0 : i32
    return %arg0, %c0_i32, %c0_i32_0 : i32, i32, i32
  }
}

</mosaic_0001>

<llo_original>
// kernel: tpu_custom_call.1
$region0: #{tpu_custom_call.1}
  #allocation0 [shape = 'u32[]', space=smem, size = 0x4, offset = 0x4, fixed_abs, tag = 'smem constant byte address 0x4 - core index']
  #allocation1 [shape = 'u32[144,128]{1,0:T(1,128)}', space=vmem, size = 0x12000, scoped, tag = 'internal scratch']
  %s0 = inlined_call_operand.hbm [shape: f32[16,128], index: 0, kind: input, shape index: {}]
  %s1 = inlined_call_operand.hbm [shape: f32[16,128], index: 1, kind: input, shape index: {}]
  %s2 = inlined_call_operand.hbm [shape: f32[1,8,128], index: 2, kind: output, shape index: {}]
  %s3 = sld [smem:[#allocation0]]
  $region30: #{tpu_custom_call.1} parent=0
    _
  %s5 = ssub.s32 1, %s3
  %s6 = scalar_select 0, %s5, %s3
  $region1: #{tpu_custom_call.1} parent=0
    #allocation2 [shape = 'u8[8192]{0}', space=vmem, size = 0x2000, scoped, tag = 'input window, operand 0, single buffered']
    #allocation3 [shape = 's32[1]{0}', space=sflag, size = 0x4, scoped, tag = 'scoped memory for tpu_custom_call.1']
    #allocation4 [shape = 's32[1]{0}', space=sflag, size = 0x4, scoped, tag = 'scoped memory for tpu_custom_call.1']
    #allocation5 [shape = 'u8[8192]{0}', space=vmem, size = 0x2000, scoped, tag = 'input window, operand 1, single buffered']
    #allocation6 [shape = 's32[1]{0}', space=sflag, size = 0x4, scoped, tag = 'scoped memory for tpu_custom_call.1']
    #allocation7 [shape = 'u8[4096]{0}', space=vmem, size = 0x1000, scoped, tag = 'output window, operand 0, single buffered']
    %7 = vsyncpa [#allocation3], 0
    %8 = vsyncpa [#allocation6], 0
    %9 = vsyncpa [#allocation4], 0
    // Predicated region
    $region2: #{tpu_custom_call.1} parent=1 // pred_check
      _
    $region3: #{tpu_custom_call.1} parent=1 // pred_check_branch
      %11 = sbr.rel (0) target = $region5
    $region4: #{tpu_custom_call.1} parent=1 // pred_region
      %s12 = sadd.s32 0, 0
      %s13 = smul.u32 2, %s12
      %s15 = ssub.s32 256, 256
      %16 = vsyncadd [#allocation3], %s15
      %s17 = smul.addr %s13, 128
      %s18 = scalar_lea.hbm %s0, %s17
      %s19 = sshll.u32 [#allocation2], 4
      %s20 = int_to_ptr.vmem [resolvable:$true] %s19
      %25 = dma.hbm_to_vmem [thread:$0]  %s18, 256, %s20, [#allocation3], 128, 128, 8
    $region5: #{tpu_custom_call.1} parent=1 // pred_fallthru
      _
    // Predicated region
    $region6: #{tpu_custom_call.1} parent=1 // pred_check
      _
    $region7: #{tpu_custom_call.1} parent=1 // pred_check_branch
      %27 = sbr.rel (0) target = $region9
    $region8: #{tpu_custom_call.1} parent=1 // pred_region
      %s28 = sadd.s32 0, 0
      %s29 = smul.u32 2, %s28
      %s31 = ssub.s32 256, 256
      %32 = vsyncadd [#allocation6], %s31
      %s33 = smul.addr %s29, 128
      %s34 = scalar_lea.hbm %s1, %s33
      %s35 = sshll.u32 [#allocation5], 4
      %s36 = int_to_ptr.vmem [resolvable:$true] %s35
      %41 = dma.hbm_to_vmem [thread:$0]  %s34, 256, %s36, [#allocation6], 128, 128, 8
    $region9: #{tpu_custom_call.1} parent=1 // pred_fallthru
      _
    // Predicated region
    $region10: #{tpu_custom_call.1} parent=1 // pred_check
      _
    $region11: #{tpu_custom_call.1} parent=1 // pred_check_branch
      %43 = sbr.rel (0) target = $region13
    $region12: #{tpu_custom_call.1} parent=1 // pred_region
      %44 = dma.done [#allocation3], 256
    $region13: #{tpu_custom_call.1} parent=1 // pred_fallthru
      _
    // Predicated region
    $region14: #{tpu_custom_call.1} parent=1 // pred_check
      _
    $region15: #{tpu_custom_call.1} parent=1 // pred_check_branch
      %46 = sbr.rel (0) target = $region17
    $region16: #{tpu_custom_call.1} parent=1 // pred_region
      %47 = dma.done [#allocation6], 256
    $region17: #{tpu_custom_call.1} parent=1 // pred_fallthru
      _
    %s48 = sadd.s32 0, 0
    %s49 = smul.u32 2, %s48
    %s50 = sadd.s32 0, 0
    %s51 = smul.u32 2, %s50
    %p52 = scmp.eq.s32.totalorder 0, 0
    // Predicated region
    $region18: #{tpu_custom_call.1} parent=1 // pred_check
      %p53 = pneg %p52
    $region19: #{tpu_custom_call.1} parent=1 // pred_check_branch
      %55 = sbr.rel (%p53) target = $region21
    $region20: #{tpu_custom_call.1} parent=1 // pred_region
      %56 = vst [vmem:[#allocation7] sm:$0xff] 0.0
    $region21: #{tpu_custom_call.1} parent=1 // pred_fallthru
      _
    %v57 = vld [vmem:[#allocation2] sm:$0xff]
    %v58 = vld [vmem:[#allocation2 + $0x8] sm:$0xff]
    %v59 = vld [vmem:[#allocation5] sm:$0xff]
    %v60 = vld [vmem:[#allocation5 + $0x8] sm:$0xff]
    %v61 = vsub.f32 %v57, %v59
    %v62 = vsub.f32 %v58, %v60
    %v63 = vmul.f32 %v61, %v61
    %v64 = vmul.f32 %v62, %v62
    %v65 = vadd.f32 %v63, %v64
    %v66 = vld [vmem:[#allocation7] sm:$0xff]
    %v67 = vadd.f32 %v66, %v65
    %68 = vst [vmem:[#allocation7] sm:$0xff] %v67
    // Predicated region
    $region22: #{tpu_custom_call.1} parent=1 // pred_check
      _
    $region23: #{tpu_custom_call.1} parent=1 // pred_check_branch
      %70 = sbr.rel (0) target = $region25
    $region24: #{tpu_custom_call.1} parent=1 // pred_region
      %s72 = ssub.s32 128, 128
      %73 = vsyncadd [#allocation4], %s72
      %s75 = sshll.u32 [#allocation7], 4
      %s76 = int_to_ptr.vmem [resolvable:$true] %s75
      %78 = dma.vmem_to_hbm [thread:$0]  %s76, 128, %s2, [#allocation4]
    $region25: #{tpu_custom_call.1} parent=1 // pred_fallthru
      _
    // Predicated region
    $region26: #{tpu_custom_call.1} parent=1 // pred_check
      _
    $region27: #{tpu_custom_call.1} parent=1 // pred_check_branch
      %80 = sbr.rel (0) target = $region29
    $region28: #{tpu_custom_call.1} parent=1 // pred_region
      %81 = dma.done [#allocation4], 128
    $region29: #{tpu_custom_call.1} parent=1 // pred_fallthru
      _
    %82 = vsyncpa [#allocation3], 1
    %83 = vsyncpa [#allocation6], 1
    %84 = vsyncpa [#allocation4], 1

</llo_original>
